<compile_context>
chip_gen: v6e
topology: v6e:2x2x1
jax: 0.10.0
libtpu: 0.0.40
codegen_flags: <defaults>
</compile_context>

<pallas_src>
import functools

import jax
import jax.numpy as jnp
from jax import lax
from jax.experimental import pallas as pl
from jax.experimental.pallas import tpu as pltpu

_SUBLANES = 8
_LANES = 128
_MAX_BLOCK_ROWS = 8192           # 8192 x 128 f32 = 4 MiB per pipeline buffer
_MIN_KERNEL_ELEMS = 128 * 1024   # below this a fused XLA reduction is cheaper
_VMEM_LIMIT_BYTES = 32 * 1024 * 1024


def _round_up(x, m):
    return (x + m - 1) // m * m


def _softplus(x):
    # softplus(x) = max(x, 0) + log(1 + exp(-|x|))   (numerically stable)
    return jnp.maximum(x, 0.0) + jnp.log(1.0 + jnp.exp(-jnp.abs(x)))


def _hash_uniform_u01(idx, seed):
    """Per-element U[0,1) from a 32-bit integer hash (VPU-only int32 ops)."""
    h = idx * jnp.int32(-1640531527) + seed               # 0x9E3779B9 (wraps)
    h = h ^ ((h >> 16) & jnp.int32(0xFFFF))               # logical >> 16
    h = h * jnp.int32(-2048144789)                        # 0x85EBCA6B
    h = h ^ ((h >> 13) & jnp.int32(0x7FFFF))              # logical >> 13
    h = h * jnp.int32(-1028477387)                        # 0xC2B2AE35
    h = h ^ ((h >> 16) & jnp.int32(0xFFFF))
    u24 = (h >> 8) & jnp.int32(0x00FFFFFF)                # top 24 bits, >= 0
    return u24.astype(jnp.float32) * jnp.float32(1.0 / (1 << 24))


def _adv_side_kernel(seed_ref, x_ref, out_ref, acc_ref, *,
                     n_valid, block_rows, true_side, smooth):
    """Accumulate sum_i BCEWithLogits(x_i, t_i) for one side of the loss."""
    j = pl.program_id(0)
    nb = pl.num_programs(0)
    block_elems = block_rows * _LANES
    shape = (block_rows, _LANES)

    @pl.when(j == 0)
    def _init():
        acc_ref[...] = jnp.zeros_like(acc_ref)
        out_ref[...] = jnp.zeros_like(out_ref)

    x = x_ref[...].astype(jnp.float32)
    sp = _softplus(x)

    def elem_index():
        # Absolute element index (int32; the wrapper guards n_valid < 2**31).
        row = lax.broadcasted_iota(jnp.int32, shape, 0)
        col = lax.broadcasted_iota(jnp.int32, shape, 1)
        return j * block_elems + row * _LANES + col

    if not true_side:
        loss = sp                                          # BCE(x, t=0)
    elif not smooth:
        loss = sp - x                                      # BCE(x, t=1)
    else:
        # Smooth labels t ~ U[0.8, 1.0): BCE(x, t) = softplus(x) - x*t.
        u = _hash_uniform_u01(elem_index(), seed_ref[0])
        loss = sp - x * (jnp.float32(0.8) + jnp.float32(0.2) * u)

    def accumulate(l):
        # Fold the block into one (8,128) vreg tile with pure VPU adds; the
        # single cross-lane/XLU reduction happens once in the epilogue.
        acc_ref[...] += l.reshape(block_rows // _SUBLANES, _SUBLANES,
                                  _LANES).sum(axis=0)

    if n_valid % block_elems != 0:
        # Only the last block can contain padding / out-of-range elements.
        @pl.when(j == nb - 1)
        def _tail():
            accumulate(jnp.where(elem_index() < n_valid, loss, 0.0))

        @pl.when(j != nb - 1)
        def _bulk():
            accumulate(loss)
    else:
        accumulate(loss)

    @pl.when(j == nb - 1)
    def _finalize():
        out_ref[...] = jnp.sum(acc_ref[...], keepdims=True)


def _side_sum_pallas(pred, *, true_side, smooth, seed, max_block_rows):
    """Streaming kernel computing sum_i BCEWithLogits(pred_i, t_i)."""
    n = int(pred.size)
    itemsize = jnp.dtype(pred.dtype).itemsize
    row_align = max(_SUBLANES, 32 // max(1, itemsize))     # 8 f32 / 16 bf16
    pad_unit = row_align * _LANES

    n_pad = _round_up(n, pad_unit)
    if n_pad >= 2 ** 31:
        raise ValueError("input too large for int32 element indexing")

    flat = pred.reshape(-1)
    if n_pad != n:
        # TODO(synk): this small copy only happens for ragged sizes; typical
        # discriminator outputs divide evenly and stream with zero extra copies.
        flat = jnp.pad(flat, (0, n_pad - n))
    rows = n_pad // _LANES
    slab = flat.reshape(rows, _LANES)

    block_rows = min(_round_up(max(max_block_rows, row_align), row_align), rows)
    grid = pl.cdiv(rows, block_rows)

    kernel = functools.partial(
        _adv_side_kernel, n_valid=n, block_rows=block_rows,
        true_side=true_side, smooth=smooth)

    out = pl.pallas_call(
        kernel,
        out_shape=jax.ShapeDtypeStruct((1, 1), jnp.float32),
        grid_spec=pltpu.PrefetchScalarGridSpec(
            num_scalar_prefetch=1,
            grid=(grid,),
            in_specs=[pl.BlockSpec((block_rows, _LANES),
                                   lambda j, seed_ref: (j, 0))],
            out_specs=pl.BlockSpec((1, 1), lambda j, seed_ref: (0, 0)),
            scratch_shapes=[pltpu.VMEM((_SUBLANES, _LANES), jnp.float32)],
        ),
        compiler_params=pltpu.CompilerParams(
            dimension_semantics=("arbitrary",),
            vmem_limit_bytes=_VMEM_LIMIT_BYTES),
    )(seed, slab)
    return out[0, 0]


def _side_sum_xla(pred, *, true_side, smooth, key):
    """Small-input fast path (fused XLA reduction)."""
    x = pred.reshape(-1).astype(jnp.float32)
    sp = _softplus(x)
    if not true_side:
        return jnp.sum(sp)
    if not smooth:
        return jnp.sum(sp - x)
    # NOTE: fast path draws labels with jax.random while the kernel path uses
    # the in-kernel hash; statistically equivalent, not bit-identical.
    t = jax.random.uniform(key, x.shape, jnp.float32, minval=0.8, maxval=1.0)
    return jnp.sum(sp - x * t)


def basic_adv_loss(pred_true, pred_false, *, smooth_label, key=None,
                   max_block_rows=_MAX_BLOCK_ROWS,
                   min_kernel_elems=_MIN_KERNEL_ELEMS):
    """Forward pass of BasicAdvLoss.  Either pred may be None."""
    if pred_true is None and pred_false is None:
        raise ValueError("at least one of pred_true / pred_false is required")

    n_true = 0 if pred_true is None else int(pred_true.size)
    n_false = 0 if pred_false is None else int(pred_false.size)

    # (mean_true + mean_false) / 2, or a plain mean when only one side exists,
    # implemented as scalar weights on the per-side sums.
    both = (n_true > 0) and (n_false > 0)
    w_true = ((0.5 if both else 1.0) / n_true) if n_true else 0.0
    w_false = ((0.5 if both else 1.0) / n_false) if n_false else 0.0

    need_rng = bool(smooth_label) and n_true > 0
    if need_rng and key is None:
        key = jax.random.PRNGKey(0)

    zero_seed = jnp.zeros((1,), jnp.int32)
    total = jnp.float32(0.0)

    if n_true > 0:
        if need_rng:
            seed = jax.random.randint(key, (1,), 0, jnp.iinfo(jnp.int32).max,
                                      dtype=jnp.int32)
        else:
            seed = zero_seed
        if n_true < min_kernel_elems:
            s = _side_sum_xla(pred_true, true_side=True, smooth=need_rng,
                              key=key)
        else:
            s = _side_sum_pallas(pred_true, true_side=True, smooth=need_rng,
                                 seed=seed, max_block_rows=max_block_rows)
        total = total + jnp.float32(w_true) * s

    if n_false > 0:
        if n_false < min_kernel_elems:
            s = _side_sum_xla(pred_false, true_side=False, smooth=False,
                              key=None)
        else:
            s = _side_sum_pallas(pred_false, true_side=False, smooth=False,
                                 seed=zero_seed, max_block_rows=max_block_rows)
        total = total + jnp.float32(w_false) * s

    return total


if __name__ == "__main__":
    key = jax.random.PRNGKey(0)
    k_true, k_false, k_smooth, k_odd = jax.random.split(key, 4)

    # Patch-discriminator style outputs, NCHW.
    pred_true = jax.random.normal(k_true, (2, 1, 64, 64), jnp.float32)
    pred_false = jax.random.normal(k_false, (2, 1, 64, 64), jnp.float32)

    def ref_bce_mean(x, t):
        x = x.astype(jnp.float32)
        return jnp.mean(jnp.maximum(x, 0.0) - x * t
                        + jnp.log1p(jnp.exp(-jnp.abs(x))))

    # 1) smooth_label=False, both predictions, kernel path forced.
    loss_a = jax.block_until_ready(
        basic_adv_loss(pred_true, pred_false, smooth_label=False,
                       min_kernel_elems=0))
    ref_a = (ref_bce_mean(pred_true, 1.0) + ref_bce_mean(pred_false, 0.0)) / 2
    assert jnp.allclose(loss_a, ref_a, rtol=1e-5, atol=1e-6), (loss_a, ref_a)

    # 2) Small blocks: exercises the multi-block grid + vreg-tile accumulator.
    loss_b = jax.block_until_ready(
        basic_adv_loss(pred_true, pred_false, smooth_label=False,
                       min_kernel_elems=0, max_block_rows=16))
    assert jnp.allclose(loss_b, ref_a, rtol=1e-5, atol=1e-6), (loss_b, ref_a)

    # 3) Single-sided branches (pred_true is None / pred_false is None).
    loss_f = jax.block_until_ready(
        basic_adv_loss(None, pred_false, smooth_label=False,
                       min_kernel_elems=0))
    assert jnp.allclose(loss_f, ref_bce_mean(pred_false, 0.0),
                        rtol=1e-5, atol=1e-6), loss_f
    loss_t = jax.block_until_ready(
        basic_adv_loss(pred_true, None, smooth_label=False,
                       min_kernel_elems=0))
    assert jnp.allclose(loss_t, ref_bce_mean(pred_true, 1.0),
                        rtol=1e-5, atol=1e-6), loss_t

    # 4) Ragged size (1155 elems, not a multiple of 1024): pad + tail masking.
    pred_odd = jax.random.normal(k_odd, (3, 5, 7, 11), jnp.float32)
    loss_o = jax.block_until_ready(
        basic_adv_loss(pred_odd, None, smooth_label=False, min_kernel_elems=0))
    assert jnp.allclose(loss_o, ref_bce_mean(pred_odd, 1.0),
                        rtol=1e-5, atol=1e-6), loss_o

    # 5) bf16 inputs stream natively and are upcast in-kernel.
    loss_h = jax.block_until_ready(
        basic_adv_loss(pred_true.astype(jnp.bfloat16),
                       pred_false.astype(jnp.bfloat16),
                       smooth_label=False, min_kernel_elems=0))
    ref_h = (ref_bce_mean(pred_true.astype(jnp.bfloat16), 1.0)
             + ref_bce_mean(pred_false.astype(jnp.bfloat16), 0.0)) / 2
    assert jnp.allclose(loss_h, ref_h, rtol=1e-5, atol=1e-6), (loss_h, ref_h)

    # 6) smooth_label=True: labels drawn in-kernel from U[0.8, 1.0); the
    #    per-element loss is linear in t, so the mean is bounded by its values
    #    at t=0.8 and t=1.0.
    loss_s = jax.block_until_ready(
        basic_adv_loss(pred_true, pred_false, smooth_label=True,
                       key=k_smooth, min_kernel_elems=0))
    xt = pred_true.astype(jnp.float32)
    sp = jnp.maximum(xt, 0.0) + jnp.log1p(jnp.exp(-jnp.abs(xt)))
    l_lo = jnp.mean(jnp.minimum(sp - 0.8 * xt, sp - xt))
    l_hi = jnp.mean(jnp.maximum(sp - 0.8 * xt, sp - xt))
    false_part = ref_bce_mean(pred_false, 0.0)
    lo = (l_lo + false_part) / 2.0
    hi = (l_hi + false_part) / 2.0
    assert float(lo) - 1e-5 <= float(loss_s) <= float(hi) + 1e-5, \
        (lo, loss_s, hi)

    print("KERNEL_OK")
</pallas_src>

<mosaic_0001>
module attributes {stable_mosaic.version = 11 : i64} {
  func.func @_adv_side_kernel(%arg0: i32, %arg1: memref<1xi32, #tpu.memory_space<smem>>, %arg2: memref<64x128xf32, #tpu.memory_space<vmem>>, %arg3: memref<1x1xf32, #tpu.memory_space<vmem>>, %arg4: memref<8x128xf32, #tpu.memory_space<vmem>>) attributes {dimension_semantics = [#tpu.dimension_semantics<arbitrary>], iteration_bounds = array<i64: 1>, scalar_prefetch = 1 : i64, scratch_operands = 1 : i64, tpu.core_type = #tpu.core_type<tc>, window_params = [{transform_indices = @transform_0, window_bounds = array<i64: 64, 128>}, {pipeline_mode = #tpu.pipeline_mode<synchronous>, transform_indices = @transform_1, window_bounds = array<i64: 1, 1>}]} {
    %c0_i32 = arith.constant 0 : i32
    %0 = arith.cmpi eq, %arg0, %c0_i32 : i32
    %1 = arith.extui %0 : i1 to i32
    %c0_i32_0 = arith.constant 0 : i32
    %2 = arith.cmpi ne, %1, %c0_i32_0 : i32
    scf.if %2 {
      %cst_11 = arith.constant 0.000000e+00 : f32
      %23 = vector.broadcast %cst_11 : f32 to vector<8x128xf32>
      %c0_12 = arith.constant 0 : index
      %c0_13 = arith.constant 0 : index
      %24 = vector.load %arg4[%c0_12, %c0_13] : memref<8x128xf32, #tpu.memory_space<vmem>>, vector<8x128xf32>
      tpu.vector_store %arg4[%c0_12, %c0_13], %23 {strides = array<i32>} : memref<8x128xf32, #tpu.memory_space<vmem>>, vector<8x128xf32>,
      %cst_14 = arith.constant 0.000000e+00 : f32
      %25 = vector.broadcast %cst_14 : f32 to vector<1x1xf32>
      %c0_15 = arith.constant 0 : index
      %c0_16 = arith.constant 0 : index
      %26 = vector.load %arg3[%c0_15, %c0_16] : memref<1x1xf32, #tpu.memory_space<vmem>>, vector<1x1xf32>
      tpu.vector_store %arg3[%c0_15, %c0_16], %25 {strides = array<i32>} : memref<1x1xf32, #tpu.memory_space<vmem>>, vector<1x1xf32>,
    } else {
    }
    %c0 = arith.constant 0 : index
    %c0_1 = arith.constant 0 : index
    %3 = vector.load %arg2[%c0, %c0_1] : memref<64x128xf32, #tpu.memory_space<vmem>>, vector<64x128xf32>
    %cst = arith.constant 0.000000e+00 : f32
    %4 = vector.broadcast %cst : f32 to vector<64x128xf32>
    %5 = arith.maximumf %3, %4 : vector<64x128xf32>
    %6 = math.absf %3 : vector<64x128xf32>
    %cst_2 = arith.constant 0.000000e+00 : f32
    %7 = vector.broadcast %cst_2 : f32 to vector<64x128xf32>
    %8 = arith.subf %7, %6 : vector<64x128xf32>
    %9 = math.exp %8 : vector<64x128xf32>
    %cst_3 = arith.constant 1.000000e+00 : f32
    %10 = vector.broadcast %cst_3 : f32 to vector<64x128xf32>
    %11 = arith.addf %10, %9 : vector<64x128xf32>
    %12 = math.log %11 : vector<64x128xf32>
    %13 = arith.addf %5, %12 : vector<64x128xf32>
    %14 = arith.subf %13, %3 : vector<64x128xf32>
    %c0_4 = arith.constant 0 : index
    %c0_5 = arith.constant 0 : index
    %15 = vector.load %arg4[%c0_4, %c0_5] : memref<8x128xf32, #tpu.memory_space<vmem>>, vector<8x128xf32>
    %16 = vector.shape_cast %14 : vector<64x128xf32> to vector<8x8x128xf32>
    %cst_6 = arith.constant dense<0.000000e+00> : vector<8x128xf32>
    %17 = vector.multi_reduction <add>, %16, %cst_6 [0] : vector<8x8x128xf32> to vector<8x128xf32>
    %18 = arith.addf %15, %17 : vector<8x128xf32>
    %c0_7 = arith.constant 0 : index
    %c0_8 = arith.constant 0 : index
    %19 = vector.load %arg4[%c0_7, %c0_8] : memref<8x128xf32, #tpu.memory_space<vmem>>, vector<8x128xf32>
    tpu.vector_store %arg4[%c0_7, %c0_8], %18 {strides = array<i32>} : memref<8x128xf32, #tpu.memory_space<vmem>>, vector<8x128xf32>,
    %c0_i32_9 = arith.constant 0 : i32
    %20 = arith.cmpi eq, %arg0, %c0_i32_9 : i32
    %21 = arith.extui %20 : i1 to i32
    %c0_i32_10 = arith.constant 0 : i32
    %22 = arith.cmpi ne, %21, %c0_i32_10 : i32
    scf.if %22 {
      %c0_11 = arith.constant 0 : index
      %c0_12 = arith.constant 0 : index
      %23 = vector.load %arg4[%c0_11, %c0_12] : memref<8x128xf32, #tpu.memory_space<vmem>>, vector<8x128xf32>
      %24 = vector.shape_cast %23 : vector<8x128xf32> to vector<1x8x128xf32>
      %cst_13 = arith.constant dense<0.000000e+00> : vector<1xf32>
      %25 = vector.multi_reduction <add>, %24, %cst_13 [1, 2] : vector<1x8x128xf32> to vector<1xf32>
      %26 = vector.shape_cast %25 : vector<1xf32> to vector<1x1x1xf32>
      %27 = vector.extract %26[0, 0, 0] : f32 from vector<1x1x1xf32>
      %28 = vector.broadcast %27 : f32 to vector<1x1xf32>
      %c0_14 = arith.constant 0 : index
      %c0_15 = arith.constant 0 : index
      %29 = vector.load %arg3[%c0_14, %c0_15] : memref<1x1xf32, #tpu.memory_space<vmem>>, vector<1x1xf32>
      tpu.vector_store %arg3[%c0_14, %c0_15], %28 {strides = array<i32>} : memref<1x1xf32, #tpu.memory_space<vmem>>, vector<1x1xf32>,
    } else {
    }
    return
  }
  func.func @transform_0(%arg0: i32, %arg1: memref<1xi32, #tpu.memory_space<smem>>) -> (i32, i32) {
    %c0_i32 = arith.constant 0 : i32
    %c0_i32_0 = arith.constant 0 : i32
    return %arg0, %c0_i32 : i32, i32
  }
  func.func @transform_1(%arg0: i32, %arg1: memref<1xi32, #tpu.memory_space<smem>>) -> (i32, i32) {
    %c0_i32 = arith.constant 0 : i32
    %c0_i32_0 = arith.constant 0 : i32
    %c0_i32_1 = arith.constant 0 : i32
    return %c0_i32, %c0_i32_0 : i32, i32
  }
}

</mosaic_0001>

<llo_original>
// kernel: tpu_custom_call.1
$region0: #{tpu_custom_call.1}
  #allocation0 [shape = 'u32[]', space=smem, size = 0x4, offset = 0x4, fixed_abs, tag = 'smem constant byte address 0x4 - core index']
  #allocation1 [shape = 'u32[144,128]{1,0:T(1,128)}', space=vmem, size = 0x12000, scoped, tag = 'internal scratch']
  #allocation2 [shape = 'f32[8,128]{1,0:T(8,128)}', space=vmem, size = 0x1000, scoped, tag = 'scratch operand']
  #allocation3 [shape = 's32[1]{0}', space=sflag, size = 0x4, scoped, tag = 'scoped memory for tpu_custom_call.1']
  #allocation4 [shape = 's32[1]{0:T(128)S(6)}', space=smem, size = 0x200, scoped, tag = 'prefetched SMEM operand 0']
  %s0 = inlined_call_operand.<no memory space> [shape: s32[1], index: 0, kind: input, shape index: {}]
  %s1 = inlined_call_operand.hbm [shape: f32[64,128], index: 1, kind: input, shape index: {}]
  %s2 = inlined_call_operand.hbm [shape: f32[1,1], index: 2, kind: output, shape index: {}]
  %s3 = sld [smem:[#allocation0]]
  $region26: #{tpu_custom_call.1} parent=0
    _
  %s5 = ssub.s32 1, %s3
  %s6 = scalar_select 0, %s5, %s3
  %7 = sst [smem:[#allocation4]] %s0
  $region1: #{tpu_custom_call.1} parent=0
    #allocation5 [shape = 'u8[32768]{0}', space=vmem, size = 0x8000, scoped, tag = 'input window, operand 1, single buffered']
    #allocation6 [shape = 's32[1]{0}', space=sflag, size = 0x4, scoped, tag = 'scoped memory for tpu_custom_call.1']
    #allocation7 [shape = 's32[1]{0}', space=sflag, size = 0x4, scoped, tag = 'scoped memory for tpu_custom_call.1']
    #allocation8 [shape = 'u8[512]{0}', space=vmem, size = 0x400, scoped, tag = 'output window, operand 0, single buffered']
    %8 = vsyncpa [#allocation6], 0
    %9 = vsyncpa [#allocation7], 0
    // Predicated region
    $region2: #{tpu_custom_call.1} parent=1 // pred_check
      _
    $region3: #{tpu_custom_call.1} parent=1 // pred_check_branch
      %11 = sbr.rel (0) target = $region5
    $region4: #{tpu_custom_call.1} parent=1 // pred_region
      %s13 = ssub.s32 1024, 1024
      %14 = vsyncadd [#allocation6], %s13
      %s15 = sshll.u32 [#allocation5], 4
      %s16 = int_to_ptr.vmem [resolvable:$true] %s15
      %21 = dma.hbm_to_vmem [thread:$0]  %s1, 1024, %s16, [#allocation6], 128, 128, 8
    $region5: #{tpu_custom_call.1} parent=1 // pred_fallthru
      _
    // Predicated region
    $region6: #{tpu_custom_call.1} parent=1 // pred_check
      _
    $region7: #{tpu_custom_call.1} parent=1 // pred_check_branch
      %23 = sbr.rel (0) target = $region9
    $region8: #{tpu_custom_call.1} parent=1 // pred_region
      %24 = dma.done [#allocation6], 1024
    $region9: #{tpu_custom_call.1} parent=1 // pred_fallthru
      _
    %p25 = scmp.eq.s32.totalorder 0, 0
    // Predicated region
    $region10: #{tpu_custom_call.1} parent=1 // pred_check
      %p26 = pneg %p25
    $region11: #{tpu_custom_call.1} parent=1 // pred_check_branch
      %28 = sbr.rel (%p26) target = $region13
    $region12: #{tpu_custom_call.1} parent=1 // pred_region
      %29 = vst [vmem:[#allocation2] sm:$0xff] 0.0
      %vm30 = vcmask 0
      %31 = vst.msk [vmem:[#allocation8] sm:$0x1] %vm30, 0.0
    $region13: #{tpu_custom_call.1} parent=1 // pred_fallthru
      _
    %v32 = vld [vmem:[#allocation5] sm:$0xff]
    %v33 = vld [vmem:[#allocation5 + $0x8] sm:$0xff]
    %v34 = vld [vmem:[#allocation5 + $0x10] sm:$0xff]
    %v35 = vld [vmem:[#allocation5 + $0x18] sm:$0xff]
    %v36 = vld [vmem:[#allocation5 + $0x20] sm:$0xff]
    %v37 = vld [vmem:[#allocation5 + $0x28] sm:$0xff]
    %v38 = vld [vmem:[#allocation5 + $0x30] sm:$0xff]
    %v39 = vld [vmem:[#allocation5 + $0x38] sm:$0xff]
    %v40 = vmax.f32 %v32, 0.0
    %v41 = vmax.f32 %v33, 0.0
    %v42 = vmax.f32 %v34, 0.0
    %v43 = vmax.f32 %v35, 0.0
    %v44 = vmax.f32 %v36, 0.0
    %v45 = vmax.f32 %v37, 0.0
    %v46 = vmax.f32 %v38, 0.0
    %v47 = vmax.f32 %v39, 0.0
    %v48 = vand.u32 2147483647, %v32
    %v49 = vand.u32 2147483647, %v33
    %v50 = vand.u32 2147483647, %v34
    %v51 = vand.u32 2147483647, %v35
    %v52 = vand.u32 2147483647, %v36
    %v53 = vand.u32 2147483647, %v37
    %v54 = vand.u32 2147483647, %v38
    %v55 = vand.u32 2147483647, %v39
    %v56 = vsub.f32 0.0, %v48
    %v57 = vsub.f32 0.0, %v49
    %v58 = vsub.f32 0.0, %v50
    %v59 = vsub.f32 0.0, %v51
    %v60 = vsub.f32 0.0, %v52
    %v61 = vsub.f32 0.0, %v53
    %v62 = vsub.f32 0.0, %v54
    %v63 = vsub.f32 0.0, %v55
    %v64 = vmul.f32 %v56, 1.442695
    %v65 = vpow.pop %v64
    %v66 = vmul.f32 %v57, 1.442695
    %v67 = vpow.pop %v66
    %v68 = vmul.f32 %v58, 1.442695
    %v69 = vpow.pop %v68
    %v70 = vmul.f32 %v59, 1.442695
    %v71 = vpow.pop %v70
    %v72 = vmul.f32 %v60, 1.442695
    %v73 = vpow.pop %v72
    %v74 = vmul.f32 %v61, 1.442695
    %v75 = vpow.pop %v74
    %v76 = vmul.f32 %v62, 1.442695
    %v77 = vpow.pop %v76
    %v78 = vmul.f32 %v63, 1.442695
    %v79 = vpow.pop %v78
    %v80 = vadd.f32 %v65, 1.0
    %v81 = vadd.f32 %v67, 1.0
    %v82 = vadd.f32 %v69, 1.0
    %v83 = vadd.f32 %v71, 1.0
    %v84 = vadd.f32 %v73, 1.0
    %v85 = vadd.f32 %v75, 1.0
    %v86 = vadd.f32 %v77, 1.0
    %v87 = vadd.f32 %v79, 1.0
    %v88 = vlog2.pop %v80
    %v89 = vmul.f32 %v88, 0.6931472
    %v90 = vlog2.pop %v81
    %v91 = vmul.f32 %v90, 0.6931472
    %v92 = vlog2.pop %v82
    %v93 = vmul.f32 %v92, 0.6931472
    %v94 = vlog2.pop %v83
    %v95 = vmul.f32 %v94, 0.6931472
    %v96 = vlog2.pop %v84
    %v97 = vmul.f32 %v96, 0.6931472
    %v98 = vlog2.pop %v85
    %v99 = vmul.f32 %v98, 0.6931472
    %v100 = vlog2.pop %v86
    %v101 = vmul.f32 %v100, 0.6931472
    %v102 = vlog2.pop %v87
    %v103 = vmul.f32 %v102, 0.6931472
    %v104 = vadd.f32 %v40, %v89
    %v105 = vadd.f32 %v41, %v91
    %v106 = vadd.f32 %v42, %v93
    %v107 = vadd.f32 %v43, %v95
    %v108 = vadd.f32 %v44, %v97
    %v109 = vadd.f32 %v45, %v99
    %v110 = vadd.f32 %v46, %v101
    %v111 = vadd.f32 %v47, %v103
    %v112 = vsub.f32 %v104, %v32
    %v113 = vsub.f32 %v105, %v33
    %v114 = vsub.f32 %v106, %v34
    %v115 = vsub.f32 %v107, %v35
    %v116 = vsub.f32 %v108, %v36
    %v117 = vsub.f32 %v109, %v37
    %v118 = vsub.f32 %v110, %v38
    %v119 = vsub.f32 %v111, %v39
    %v120 = vld [vmem:[#allocation2] sm:$0xff]
    %v121 = vadd.f32 %v112, %v113
    %v122 = vadd.f32 %v121, %v114
    %v123 = vadd.f32 %v122, %v115
    %v124 = vadd.f32 %v123, %v116
    %v125 = vadd.f32 %v124, %v117
    %v126 = vadd.f32 %v125, %v118
    %v127 = vadd.f32 %v126, %v119
    %v128 = vadd.f32 %v120, %v127
    %129 = vst [vmem:[#allocation2] sm:$0xff] %v128
    // Predicated region
    $region14: #{tpu_custom_call.1} parent=1 // pred_check
      %p130 = pneg %p25
    $region15: #{tpu_custom_call.1} parent=1 // pred_check_branch
      %132 = sbr.rel (%p130) target = $region17
    $region16: #{tpu_custom_call.1} parent=1 // pred_region
      %v133 = vld [vmem:[#allocation2] sm:$0xff]
      %134 = vadd.xlane.f32.xlu0 %v133
      %v135 = vpop.xlane.xlu0 %134
      %v136 = vrot.slane %v135, 4
      %v137 = vadd.f32 %v135, %v136
      %v138 = vrot.slane %v137, 2
      %v139 = vadd.f32 %v137, %v138
      %v140 = vrot.slane %v139, 1
      %v141 = vadd.f32 %v139, %v140
      %s142 = vtos %v141
      %v143 = vstv %s142
      %vm144 = vcmask 0
      %145 = vst.msk [vmem:[#allocation8] sm:$0x1] %vm144, %v143
    $region17: #{tpu_custom_call.1} parent=1 // pred_fallthru
      _
    // Predicated region
    $region18: #{tpu_custom_call.1} parent=1 // pred_check
      _
    $region19: #{tpu_custom_call.1} parent=1 // pred_check_branch
      %147 = sbr.rel (0) target = $region21
    $region20: #{tpu_custom_call.1} parent=1 // pred_region
      %s149 = ssub.s32 16, 16
      %150 = vsyncadd [#allocation7], %s149
      %s152 = sshll.u32 [#allocation8], 4
      %s153 = int_to_ptr.vmem [resolvable:$true] %s152
      %155 = dma.vmem_to_hbm [thread:$0]  %s153, 16, %s2, [#allocation7]
    $region21: #{tpu_custom_call.1} parent=1 // pred_fallthru
      _
    // Predicated region
    $region22: #{tpu_custom_call.1} parent=1 // pred_check
      _
    $region23: #{tpu_custom_call.1} parent=1 // pred_check_branch
      %157 = sbr.rel (0) target = $region25
    $region24: #{tpu_custom_call.1} parent=1 // pred_region
      %158 = dma.done [#allocation7], 16
    $region25: #{tpu_custom_call.1} parent=1 // pred_fallthru
      _
    %159 = vsyncpa [#allocation6], 1
    %160 = vsyncpa [#allocation7], 1

</llo_original>
